<compile_context>
chip_gen: v7x
topology: tpu7x:2x2x1
jax: 0.10.0
libtpu: 0.0.40
codegen_flags: <defaults>
</compile_context>

<pallas_src>
import functools
import math

import jax
import jax.numpy as jnp
from jax.experimental import pallas as pl
from jax.experimental.pallas import tpu as pltpu


def _residual_block_kernel(x_ref, w_ref, aux_ref, o_ref, *, H, W, C, K,
                           approx_gelu):
    """One strip of `block_images` complete images per grid step.

    x_ref  : (R, W*C)   input rows (R = block_images * H), io dtype
    w_ref  : (K*K, W*C) per-tap depthwise weights, tiled over W, with the
                        W-boundary ("same" pad) mask already folded in (f32)
    aux_ref: (3, W*C)   [conv bias, BN scale, BN shift], tiled over W (f32)
    o_ref  : (R, W*C)   output rows, io dtype
    """
    R, WC = x_ref.shape
    pad = (K - 1) // 2

    # Load once; compute in f32 regardless of the HBM/I-O dtype.
    x = x_ref[...].astype(jnp.float32)

    # Row index inside each image (hoisted out of the tap loop).
    row_in_img = jax.lax.broadcasted_iota(jnp.int32, (R, 1), 0) % H

    # Accumulator starts at the (broadcast) conv bias.
    acc = jnp.broadcast_to(aux_ref[0, :], (R, WC))

    # Depthwise KxK "same" conv via K*K shifted MACs; shifts go through the
    # XLU (pltpu.roll), boundaries via masks -- no padded copy, no unaligned
    # sublane slices.
    for ky in range(K):
        dy = ky - pad
        if dy == 0:
            x_dy = x
        else:
            # shifted[h] = x[h + dy]; rows that wrapped across an image
            # boundary are zeroed right below (mask is periodic in H, so a
            # block may hold several images).
            x_dy = pltpu.roll(x, shift=(-dy) % R, axis=0)
            if dy > 0:
                row_ok = row_in_img < (H - dy)
            else:
                row_ok = row_in_img >= (-dy)
            x_dy = jnp.where(row_ok, x_dy, 0.0)
        for kx in range(K):
            dx = kx - pad
            if dx == 0:
                shifted = x_dy
            else:
                # shifted[w*C + c] = x_dy[(w+dx)*C + c]; the W-boundary is
                # handled by the zeros folded into w_ref in the wrapper.
                shifted = pltpu.roll(x_dy, shift=(-dx * C) % WC, axis=1)
            acc = acc + shifted * w_ref[ky * K + kx, :]

    if approx_gelu:
        # tanh-approximate GELU: tanh runs on the (otherwise idle) EUP,
        # cutting VALU ops vs the long erf polynomial.  Numerics differ
        # slightly from torch's default exact GELU.
        c = math.sqrt(2.0 / math.pi)
        y = 0.5 * acc * (1.0 + jnp.tanh(c * (acc + 0.044715 * acc * acc * acc)))
    else:
        # Exact (erf) GELU -- matches torch.nn.GELU() default.
        y = 0.5 * acc * (1.0 + jax.lax.erf(acc * (1.0 / math.sqrt(2.0))))

    # Folded BatchNorm2d (eval) affine.
    y = y * aux_ref[1, :] + aux_ref[2, :]
    # Residual add straight from the input tile (no second input stream).
    o_ref[...] = (y + x).astype(o_ref.dtype)


def _tpu_vmem_capacity_bytes():
    """Per-TensorCore VMEM capacity; conservative (v7x-like) fallback."""
    try:
        return int(pltpu.get_tpu_info().vmem_capacity_bytes)
    except Exception:  # pragma: no cover - older jax / non-TPU tracing
        return 64 << 20


def residual_convmixer_block(x_nchw, w_dw, b_dw, bn_gamma, bn_beta, bn_mean,
                             bn_var, *, eps=1e-5, block_images=None,
                             approximate_gelu=False):
    """Residual(fn)(x) with fn = depthwise conv (same pad) -> GELU -> BN(eval).

    x_nchw : (N, C, H, W)   activations; output dtype == input dtype.
                            Passing bf16 halves HBM traffic on every TPU
                            generation (v5e is the most memory-bound; the
                            in-kernel math stays f32 so no bf16 VPU needed).
    w_dw   : (C, K, K)      depthwise weights (PyTorch Conv2d(groups=C) layout)
    b_dw   : (C,)           conv bias
    bn_*   : (C,)           BatchNorm2d running stats / affine params
    """
    N, C, H, W = x_nchw.shape
    K = w_dw.shape[-1]
    pad = (K - 1) // 2
    WC = W * C
    io_dtype = x_nchw.dtype

    # ---- fold BatchNorm (inference) into per-channel scale/shift ------------
    bn_scale = (bn_gamma.astype(jnp.float32) /
                jnp.sqrt(bn_var.astype(jnp.float32) + eps))
    bn_shift = bn_beta.astype(jnp.float32) - bn_mean.astype(jnp.float32) * bn_scale

    # ---- lane-dense activation layout: (N, C, H, W) -> (N*H, W*C) -----------
    # TODO(synk): in a full ConvMixer stack keep activations in this layout
    # across layers instead of paying a transpose per block.
    x2d = jnp.transpose(x_nchw, (0, 2, 3, 1)).reshape(N * H, WC)

    # ---- per-tap weights, tiled over W, W-boundary mask folded in -----------
    w_kk_c = jnp.transpose(w_dw, (1, 2, 0)).reshape(K * K, C).astype(jnp.float32)
    w_tiled = jnp.tile(w_kk_c[:, None, :], (1, W, 1))             # (K*K, W, C)
    wpos = jnp.arange(W)[None, :]
    dxs = (jnp.arange(K) - pad)[:, None]
    col_ok = ((wpos + dxs) >= 0) & ((wpos + dxs) < W)             # (K, W) by kx
    col_ok = jnp.tile(col_ok, (K, 1))                             # (K*K, W)
    w_rows = (w_tiled * col_ok[:, :, None].astype(jnp.float32)).reshape(K * K, WC)

    # ---- bias / BN scale / BN shift, tiled over W ----------------------------
    aux = jnp.stack([jnp.tile(b_dw.astype(jnp.float32), W),
                     jnp.tile(bn_scale, W),
                     jnp.tile(bn_shift, W)], axis=0)              # (3, WC)

    # ---- generation-aware VMEM ceiling & block sizing -------------------------
    itemsize = jnp.dtype(io_dtype).itemsize
    # sublane packing: 8 rows/vreg-tile for f32, 16 for bf16, 32 for int8
    sublane_align = 8 * max(1, 4 // itemsize)

    vmem_cap = _tpu_vmem_capacity_bytes()
    # v7x: 64 MiB VMEM per TensorCore (scoped default 32 MiB) -> cap at 32 MiB
    # and assume 2 TensorCores (want >= 2 pipelined steps per core).
    # v5e/v6e: 128 MiB -> allow a 64 MiB scoped limit and bigger blocks.
    looks_like_v7x = vmem_cap <= (64 << 20)
    vmem_ceiling = (32 << 20) if looks_like_v7x else (64 << 20)
    min_steps = 4 if looks_like_v7x else 2

    def per_block_vmem(rows):
        io = 2 * 2 * rows * WC * itemsize            # double-buffered in + out
        work = 4 * rows * WC * 4                     # x, shifted copy, acc, y (f32)
        const = 2 * (K * K + 3) * WC * 4             # double-buffered weights + aux
        return io + work + const

    if block_images is None:
        budget = int(0.7 * vmem_ceiling)             # leave compiler headroom
        divisors = [d for d in range(1, N + 1) if N % d == 0]
        fit = [d for d in divisors if per_block_vmem(d * H) <= budget] or [1]
        aligned = [d for d in fit if (d * H) % sublane_align == 0]
        pick = None
        # Prefer: biggest aligned block keeping >= min_steps grid steps
        # (pipeline steady state on both v7x TCs), then >= 2, then any.
        for min_s in (min_steps, 2, 1):
            cand = [d for d in aligned if N // d >= min_s]
            if cand:
                pick = max(cand)
                break
        block_images = pick if pick is not None else N
    R_blk = block_images * H
    if R_blk % 8 != 0 and R_blk != N * H:
        block_images, R_blk = N, N * H               # fall back: one block
    grid = (N * H // R_blk,)

    vmem_limit = int(min(vmem_ceiling,
                         max(int(1.5 * per_block_vmem(R_blk)), 16 << 20)))

    kernel = functools.partial(_residual_block_kernel, H=H, W=W, C=C, K=K,
                               approx_gelu=approximate_gelu)

    out2d = pl.pallas_call(
        kernel,
        out_shape=jax.ShapeDtypeStruct((N * H, WC), io_dtype),
        grid=grid,
        in_specs=[
            pl.BlockSpec((R_blk, WC), lambda i: (i, 0)),
            pl.BlockSpec((K * K, WC), lambda i: (0, 0)),
            pl.BlockSpec((3, WC), lambda i: (0, 0)),
        ],
        out_specs=pl.BlockSpec((R_blk, WC), lambda i: (i, 0)),
        # input block i and output block i cover the same HBM region and each
        # block depends only on its own tile -> safe to alias the activation.
        input_output_aliases={0: 0},
        compiler_params=pltpu.CompilerParams(
            dimension_semantics=("parallel",),
            vmem_limit_bytes=vmem_limit),
    )(x2d, w_rows, aux)

    # back to PyTorch NCHW layout
    return jnp.transpose(out2d.reshape(N, H, W, C), (0, 3, 1, 2))


def _reference(x_nchw, w_dw, b_dw, bn_gamma, bn_beta, bn_mean, bn_var,
               eps=1e-5, approximate_gelu=False):
    """Pure-JAX reference (f32 math) for correctness checking."""
    N, C, H, W = x_nchw.shape
    K = w_dw.shape[-1]
    pad = (K - 1) // 2
    x = jnp.transpose(x_nchw, (0, 2, 3, 1)).astype(jnp.float32)
    xp = jnp.pad(x, ((0, 0), (pad, pad), (pad, pad), (0, 0)))
    acc = jnp.zeros((N, H, W, C), jnp.float32)
    for ky in range(K):
        for kx in range(K):
            acc = acc + xp[:, ky:ky + H, kx:kx + W, :] * w_dw[:, ky, kx]
    acc = acc + b_dw
    if approximate_gelu:
        c = math.sqrt(2.0 / math.pi)
        y = 0.5 * acc * (1.0 + jnp.tanh(c * (acc + 0.044715 * acc ** 3)))
    else:
        y = 0.5 * acc * (1.0 + jax.lax.erf(acc / jnp.sqrt(2.0)))
    scale = bn_gamma / jnp.sqrt(bn_var + eps)
    shift = bn_beta - bn_mean * scale
    y = y * scale + shift
    return jnp.transpose(y + x, (0, 3, 1, 2))


if __name__ == "__main__":
    # Small ConvMixer-like shapes: batch=2, dim(channels)=32, spatial=16, K=3.
    N, C, H, W, K = 2, 32, 16, 16, 3

    key = jax.random.PRNGKey(0)
    k_x, k_w, k_b, k_g, k_bt, k_m, k_v = jax.random.split(key, 7)

    x = jax.random.normal(k_x, (N, C, H, W), dtype=jnp.float32)
    w_dw = jax.random.normal(k_w, (C, K, K), dtype=jnp.float32) * 0.1
    b_dw = jax.random.normal(k_b, (C,), dtype=jnp.float32) * 0.1
    bn_gamma = 1.0 + 0.1 * jax.random.normal(k_g, (C,), dtype=jnp.float32)
    bn_beta = 0.1 * jax.random.normal(k_bt, (C,), dtype=jnp.float32)
    bn_mean = 0.1 * jax.random.normal(k_m, (C,), dtype=jnp.float32)
    bn_var = jnp.abs(1.0 + 0.1 * jax.random.normal(k_v, (C,), dtype=jnp.float32))

    # f32 I/O, exact erf GELU (matches torch-default numerics).
    out = residual_convmixer_block(x, w_dw, b_dw, bn_gamma, bn_beta,
                                   bn_mean, bn_var)
    out = jax.block_until_ready(out)
    ref = _reference(x, w_dw, b_dw, bn_gamma, bn_beta, bn_mean, bn_var)
    assert out.shape == (N, C, H, W), out.shape
    assert jnp.allclose(out, ref, atol=1e-5, rtol=1e-5), "f32 mismatch vs reference"

    # bf16-at-HBM path (recommended on all generations; in-kernel math stays
    # f32, so the only extra error is the final bf16 output cast).
    x_bf16 = x.astype(jnp.bfloat16)
    out_bf16 = residual_convmixer_block(x_bf16, w_dw, b_dw, bn_gamma, bn_beta,
                                        bn_mean, bn_var)
    out_bf16 = jax.block_until_ready(out_bf16)
    ref_bf16 = _reference(x_bf16.astype(jnp.float32), w_dw, b_dw, bn_gamma,
                          bn_beta, bn_mean, bn_var)
    assert jnp.allclose(out_bf16.astype(jnp.float32), ref_bf16,
                        atol=3e-2, rtol=3e-2), "bf16 mismatch vs reference"

    # Optional tanh-approximate GELU path (EUP tanh; for VALU-bound v6e/v7x).
    out_approx = residual_convmixer_block(x_bf16, w_dw, b_dw, bn_gamma, bn_beta,
                                          bn_mean, bn_var,
                                          approximate_gelu=True)
    out_approx = jax.block_until_ready(out_approx)
    ref_approx = _reference(x_bf16.astype(jnp.float32), w_dw, b_dw, bn_gamma,
                            bn_beta, bn_mean, bn_var, approximate_gelu=True)
    assert jnp.allclose(out_approx.astype(jnp.float32), ref_approx,
                        atol=3e-2, rtol=3e-2), "approx-gelu mismatch vs reference"

    print("KERNEL_OK")
</pallas_src>

<mosaic_0001>
module attributes {stable_mosaic.version = 11 : i64} {
  func.func @_residual_block_kernel(%arg0: i32, %arg1: memref<16x512xf32, #tpu.memory_space<vmem>>, %arg2: memref<9x512xf32, #tpu.memory_space<vmem>>, %arg3: memref<3x512xf32, #tpu.memory_space<vmem>>, %arg4: memref<16x512xf32, #tpu.memory_space<vmem>>) attributes {dimension_semantics = [#tpu.dimension_semantics<parallel>], iteration_bounds = array<i64: 2>, scalar_prefetch = 0 : i64, scratch_operands = 0 : i64, tpu.core_type = #tpu.core_type<tc>, window_params = [{transform_indices = @transform_0, window_bounds = array<i64: 16, 512>}, {pipeline_mode = #tpu.pipeline_mode<synchronous>, transform_indices = @transform_1, window_bounds = array<i64: 9, 512>}, {pipeline_mode = #tpu.pipeline_mode<synchronous>, transform_indices = @transform_2, window_bounds = array<i64: 3, 512>}, {transform_indices = @transform_3, window_bounds = array<i64: 16, 512>}]} {
    %c0 = arith.constant 0 : index
    %c0_0 = arith.constant 0 : index
    %0 = vector.load %arg1[%c0, %c0_0] : memref<16x512xf32, #tpu.memory_space<vmem>>, vector<16x512xf32>
    %1 = tpu.iota {dimensions = array<i32: 0>} : vector<16x1xi32>
    %c16_i32 = arith.constant 16 : i32
    %c0_i32 = arith.constant 0 : i32
    %2 = arith.cmpi eq, %c16_i32, %c0_i32 : i32
    %c1_i32 = arith.constant 1 : i32
    %3 = arith.select %2, %c1_i32, %c16_i32 : i32
    %4 = vector.broadcast %3 : i32 to vector<16x1xi32>
    %5 = arith.remsi %1, %4 : vector<16x1xi32>
    %c0_i32_1 = arith.constant 0 : i32
    %6 = vector.broadcast %c0_i32_1 : i32 to vector<16x1xi32>
    %7 = arith.cmpi ne, %5, %6 : vector<16x1xi32>
    %c0_i32_2 = arith.constant 0 : i32
    %8 = vector.broadcast %c0_i32_2 : i32 to vector<16x1xi32>
    %9 = arith.cmpi slt, %5, %8 : vector<16x1xi32>
    %c0_i32_3 = arith.constant 0 : i32
    %10 = arith.cmpi slt, %3, %c0_i32_3 : i32
    %11 = vector.broadcast %10 : i1 to vector<16x1xi1>
    %12 = vector.broadcast %11 : vector<16x1xi1> to vector<16x1xi1>
    %13 = arith.xori %9, %12 : vector<16x1xi1>
    %14 = arith.andi %13, %7 : vector<16x1xi1>
    %15 = vector.broadcast %3 : i32 to vector<16x1xi32>
    %16 = arith.addi %5, %15 : vector<16x1xi32>
    %17 = arith.select %14, %16, %5 : vector<16x1xi1>, vector<16x1xi32>
    %c0_4 = arith.constant 0 : index
    %c0_5 = arith.constant 0 : index
    %18 = vector.load %arg3[%c0_4, %c0_5] : memref<3x512xf32, #tpu.memory_space<vmem>>, vector<1x512xf32>
    %19 = vector.shape_cast %18 : vector<1x512xf32> to vector<512xf32>
    %20 = vector.shape_cast %19 : vector<512xf32> to vector<1x512xf32>
    %21 = vector.broadcast %20 : vector<1x512xf32> to vector<16x512xf32>
    %c1_i32_6 = arith.constant 1 : i32
    %22 = tpu.dynamic_rotate %0 by %c1_i32_6 dim 0 : vector<16x512xf32>, i32 -> vector<16x512xf32>
    %c1_i32_7 = arith.constant 1 : i32
    %23 = vector.broadcast %c1_i32_7 : i32 to vector<16x1xi32>
    %24 = arith.cmpi sge, %17, %23 : vector<16x1xi32>
    %cst = arith.constant 0.000000e+00 : f32
    %25 = vector.shape_cast %24 : vector<16x1xi1> to vector<16x1xi1>
    %26 = vector.broadcast %25 : vector<16x1xi1> to vector<16x512xi1>
    %27 = vector.broadcast %cst : f32 to vector<16x512xf32>
    %28 = arith.select %26, %22, %27 : vector<16x512xi1>, vector<16x512xf32>
    %c32_i32 = arith.constant 32 : i32
    %29 = tpu.dynamic_rotate %28 by %c32_i32 dim 1 : vector<16x512xf32>, i32 -> vector<16x512xf32>
    %c0_8 = arith.constant 0 : index
    %c0_9 = arith.constant 0 : index
    %30 = vector.load %arg2[%c0_8, %c0_9] : memref<9x512xf32, #tpu.memory_space<vmem>>, vector<1x512xf32>
    %31 = vector.shape_cast %30 : vector<1x512xf32> to vector<512xf32>
    %32 = vector.shape_cast %31 : vector<512xf32> to vector<1x512xf32>
    %33 = vector.broadcast %32 : vector<1x512xf32> to vector<16x512xf32>
    %34 = arith.mulf %29, %33 : vector<16x512xf32>
    %35 = arith.addf %21, %34 : vector<16x512xf32>
    %c1 = arith.constant 1 : index
    %c0_10 = arith.constant 0 : index
    %36 = vector.load %arg2[%c1, %c0_10] : memref<9x512xf32, #tpu.memory_space<vmem>>, vector<1x512xf32>
    %37 = vector.shape_cast %36 : vector<1x512xf32> to vector<512xf32>
    %38 = vector.shape_cast %37 : vector<512xf32> to vector<1x512xf32>
    %39 = vector.broadcast %38 : vector<1x512xf32> to vector<16x512xf32>
    %40 = arith.mulf %28, %39 : vector<16x512xf32>
    %41 = arith.addf %35, %40 : vector<16x512xf32>
    %c480_i32 = arith.constant 480 : i32
    %42 = tpu.dynamic_rotate %28 by %c480_i32 dim 1 : vector<16x512xf32>, i32 -> vector<16x512xf32>
    %c2 = arith.constant 2 : index
    %c0_11 = arith.constant 0 : index
    %43 = vector.load %arg2[%c2, %c0_11] : memref<9x512xf32, #tpu.memory_space<vmem>>, vector<1x512xf32>
    %44 = vector.shape_cast %43 : vector<1x512xf32> to vector<512xf32>
    %45 = vector.shape_cast %44 : vector<512xf32> to vector<1x512xf32>
    %46 = vector.broadcast %45 : vector<1x512xf32> to vector<16x512xf32>
    %47 = arith.mulf %42, %46 : vector<16x512xf32>
    %48 = arith.addf %41, %47 : vector<16x512xf32>
    %c32_i32_12 = arith.constant 32 : i32
    %49 = tpu.dynamic_rotate %0 by %c32_i32_12 dim 1 : vector<16x512xf32>, i32 -> vector<16x512xf32>
    %c3 = arith.constant 3 : index
    %c0_13 = arith.constant 0 : index
    %50 = vector.load %arg2[%c3, %c0_13] : memref<9x512xf32, #tpu.memory_space<vmem>>, vector<1x512xf32>
    %51 = vector.shape_cast %50 : vector<1x512xf32> to vector<512xf32>
    %52 = vector.shape_cast %51 : vector<512xf32> to vector<1x512xf32>
    %53 = vector.broadcast %52 : vector<1x512xf32> to vector<16x512xf32>
    %54 = arith.mulf %49, %53 : vector<16x512xf32>
    %55 = arith.addf %48, %54 : vector<16x512xf32>
    %c4 = arith.constant 4 : index
    %c0_14 = arith.constant 0 : index
    %56 = vector.load %arg2[%c4, %c0_14] : memref<9x512xf32, #tpu.memory_space<vmem>>, vector<1x512xf32>
    %57 = vector.shape_cast %56 : vector<1x512xf32> to vector<512xf32>
    %58 = vector.shape_cast %57 : vector<512xf32> to vector<1x512xf32>
    %59 = vector.broadcast %58 : vector<1x512xf32> to vector<16x512xf32>
    %60 = arith.mulf %0, %59 : vector<16x512xf32>
    %61 = arith.addf %55, %60 : vector<16x512xf32>
    %c480_i32_15 = arith.constant 480 : i32
    %62 = tpu.dynamic_rotate %0 by %c480_i32_15 dim 1 : vector<16x512xf32>, i32 -> vector<16x512xf32>
    %c5 = arith.constant 5 : index
    %c0_16 = arith.constant 0 : index
    %63 = vector.load %arg2[%c5, %c0_16] : memref<9x512xf32, #tpu.memory_space<vmem>>, vector<1x512xf32>
    %64 = vector.shape_cast %63 : vector<1x512xf32> to vector<512xf32>
    %65 = vector.shape_cast %64 : vector<512xf32> to vector<1x512xf32>
    %66 = vector.broadcast %65 : vector<1x512xf32> to vector<16x512xf32>
    %67 = arith.mulf %62, %66 : vector<16x512xf32>
    %68 = arith.addf %61, %67 : vector<16x512xf32>
    %c15_i32 = arith.constant 15 : i32
    %69 = tpu.dynamic_rotate %0 by %c15_i32 dim 0 : vector<16x512xf32>, i32 -> vector<16x512xf32>
    %c15_i32_17 = arith.constant 15 : i32
    %70 = vector.broadcast %c15_i32_17 : i32 to vector<16x1xi32>
    %71 = arith.cmpi slt, %17, %70 : vector<16x1xi32>
    %cst_18 = arith.constant 0.000000e+00 : f32
    %72 = vector.shape_cast %71 : vector<16x1xi1> to vector<16x1xi1>
    %73 = vector.broadcast %72 : vector<16x1xi1> to vector<16x512xi1>
    %74 = vector.broadcast %cst_18 : f32 to vector<16x512xf32>
    %75 = arith.select %73, %69, %74 : vector<16x512xi1>, vector<16x512xf32>
    %c32_i32_19 = arith.constant 32 : i32
    %76 = tpu.dynamic_rotate %75 by %c32_i32_19 dim 1 : vector<16x512xf32>, i32 -> vector<16x512xf32>
    %c6 = arith.constant 6 : index
    %c0_20 = arith.constant 0 : index
    %77 = vector.load %arg2[%c6, %c0_20] : memref<9x512xf32, #tpu.memory_space<vmem>>, vector<1x512xf32>
    %78 = vector.shape_cast %77 : vector<1x512xf32> to vector<512xf32>
    %79 = vector.shape_cast %78 : vector<512xf32> to vector<1x512xf32>
    %80 = vector.broadcast %79 : vector<1x512xf32> to vector<16x512xf32>
    %81 = arith.mulf %76, %80 : vector<16x512xf32>
    %82 = arith.addf %68, %81 : vector<16x512xf32>
    %c7 = arith.constant 7 : index
    %c0_21 = arith.constant 0 : index
    %83 = vector.load %arg2[%c7, %c0_21] : memref<9x512xf32, #tpu.memory_space<vmem>>, vector<1x512xf32>
    %84 = vector.shape_cast %83 : vector<1x512xf32> to vector<512xf32>
    %85 = vector.shape_cast %84 : vector<512xf32> to vector<1x512xf32>
    %86 = vector.broadcast %85 : vector<1x512xf32> to vector<16x512xf32>
    %87 = arith.mulf %75, %86 : vector<16x512xf32>
    %88 = arith.addf %82, %87 : vector<16x512xf32>
    %c480_i32_22 = arith.constant 480 : i32
    %89 = tpu.dynamic_rotate %75 by %c480_i32_22 dim 1 : vector<16x512xf32>, i32 -> vector<16x512xf32>
    %c8 = arith.constant 8 : index
    %c0_23 = arith.constant 0 : index
    %90 = vector.load %arg2[%c8, %c0_23] : memref<9x512xf32, #tpu.memory_space<vmem>>, vector<1x512xf32>
    %91 = vector.shape_cast %90 : vector<1x512xf32> to vector<512xf32>
    %92 = vector.shape_cast %91 : vector<512xf32> to vector<1x512xf32>
    %93 = vector.broadcast %92 : vector<1x512xf32> to vector<16x512xf32>
    %94 = arith.mulf %89, %93 : vector<16x512xf32>
    %95 = arith.addf %88, %94 : vector<16x512xf32>
    %cst_24 = arith.constant 5.000000e-01 : f32
    %96 = vector.broadcast %cst_24 : f32 to vector<16x512xf32>
    %97 = arith.mulf %96, %95 : vector<16x512xf32>
    %cst_25 = arith.constant 0.707106769 : f32
    %98 = vector.broadcast %cst_25 : f32 to vector<16x512xf32>
    %99 = arith.mulf %95, %98 : vector<16x512xf32>
    %100 = math.erf %99 : vector<16x512xf32>
    %cst_26 = arith.constant 1.000000e+00 : f32
    %101 = vector.broadcast %cst_26 : f32 to vector<16x512xf32>
    %102 = arith.addf %101, %100 : vector<16x512xf32>
    %103 = arith.mulf %97, %102 : vector<16x512xf32>
    %c1_27 = arith.constant 1 : index
    %c0_28 = arith.constant 0 : index
    %104 = vector.load %arg3[%c1_27, %c0_28] : memref<3x512xf32, #tpu.memory_space<vmem>>, vector<1x512xf32>
    %105 = vector.shape_cast %104 : vector<1x512xf32> to vector<512xf32>
    %106 = vector.shape_cast %105 : vector<512xf32> to vector<1x512xf32>
    %107 = vector.broadcast %106 : vector<1x512xf32> to vector<16x512xf32>
    %108 = arith.mulf %103, %107 : vector<16x512xf32>
    %c2_29 = arith.constant 2 : index
    %c0_30 = arith.constant 0 : index
    %109 = vector.load %arg3[%c2_29, %c0_30] : memref<3x512xf32, #tpu.memory_space<vmem>>, vector<1x512xf32>
    %110 = vector.shape_cast %109 : vector<1x512xf32> to vector<512xf32>
    %111 = vector.shape_cast %110 : vector<512xf32> to vector<1x512xf32>
    %112 = vector.broadcast %111 : vector<1x512xf32> to vector<16x512xf32>
    %113 = arith.addf %108, %112 : vector<16x512xf32>
    %114 = arith.addf %113, %0 : vector<16x512xf32>
    %c0_31 = arith.constant 0 : index
    %c0_32 = arith.constant 0 : index
    %115 = vector.load %arg4[%c0_31, %c0_32] : memref<16x512xf32, #tpu.memory_space<vmem>>, vector<16x512xf32>
    tpu.vector_store %arg4[%c0_31, %c0_32], %114 {strides = array<i32>} : memref<16x512xf32, #tpu.memory_space<vmem>>, vector<16x512xf32>,
    return
  }
  func.func @transform_0(%arg0: i32) -> (i32, i32) {
    %c0_i32 = arith.constant 0 : i32
    %c0_i32_0 = arith.constant 0 : i32
    return %arg0, %c0_i32 : i32, i32
  }
  func.func @transform_1(%arg0: i32) -> (i32, i32) {
    %c0_i32 = arith.constant 0 : i32
    %c0_i32_0 = arith.constant 0 : i32
    %c0_i32_1 = arith.constant 0 : i32
    return %c0_i32, %c0_i32_0 : i32, i32
  }
  func.func @transform_2(%arg0: i32) -> (i32, i32) {
    %c0_i32 = arith.constant 0 : i32
    %c0_i32_0 = arith.constant 0 : i32
    %c0_i32_1 = arith.constant 0 : i32
    return %c0_i32, %c0_i32_0 : i32, i32
  }
  func.func @transform_3(%arg0: i32) -> (i32, i32) {
    %c0_i32 = arith.constant 0 : i32
    %c0_i32_0 = arith.constant 0 : i32
    return %arg0, %c0_i32 : i32, i32
  }
}

</mosaic_0001>

<llo_original>
// kernel: tpu_custom_call.1
$region0: #{tpu_custom_call.1}
  #allocation0 [shape = 'u32[]', space=smem, size = 0x4, offset = 0x4, fixed_abs, tag = 'smem constant byte address 0x4 - core index']
  #allocation1 [shape = 'u32[144,128]{1,0:T(1,128)}', space=vmem, size = 0x12000, scoped, tag = 'internal scratch']
  %s0 = inlined_call_operand.hbm [shape: f32[32,512], index: 0, kind: input, shape index: {}, may-alias: {0,3}]
  %s1 = inlined_call_operand.vmem [shape: f32[9,512], index: 1, kind: input, shape index: {}]
  %s2 = inlined_call_operand.vmem [shape: f32[3,512], index: 2, kind: input, shape index: {}]
  %s3 = inlined_call_operand.hbm [shape: f32[32,512], index: 3, kind: output, shape index: {}, may-alias: {0,3}]
  %s4 = sld [smem:[#allocation0]]
  $region49: #{tpu_custom_call.1} parent=0
    _
  %s6 = ssub.s32 1, %s4
  %s7 = scalar_select 0, %s6, %s4
  $region1: #{tpu_custom_call.1} parent=0
    #allocation2 [shape = 'u8[65536]{0}', space=vmem, size = 0x10000, scoped, tag = 'input window, operand 0']
    #allocation3 [shape = 's32[2]{0}', space=sflag, size = 0x8, scoped, tag = 'scoped memory for tpu_custom_call.1']
    #allocation4 [shape = 's32[2]{0}', space=sflag, size = 0x8, scoped, tag = 'scoped memory for tpu_custom_call.1']
    #allocation5 [shape = 'u8[65536]{0}', space=vmem, size = 0x10000, scoped, tag = 'output window, operand 0']
    %8 = vsyncpa [#allocation3], 0
    %s9 = scalar_lea.sflag [#allocation3], 1
    %10 = vsyncpa %s9, 0
    %11 = vsyncpa [#allocation4], 0
    %s12 = scalar_lea.sflag [#allocation4], 1
    %13 = vsyncpa %s12, 0
    loop: start=0, step=1, limit=4
    $region2: #{tpu_custom_call.1} parent=1 // loop_pre_header
      _
    $region3: #{tpu_custom_call.1} parent=1 // loop_header
      %s15 = sphi 0, %s19
      %p16 = scmp.ge.s32.totalorder %s15, 4
      %s25 = sphi 0, %s27
      %s28 = sphi 0, %s25
      %s29 = sphi 0, %s28
      %s45 = sphi 0, %s29
      %s49 = sphi 0, %s49
      %s51 = sphi 0, %s49
      %s52 = sphi 0, %s51
      %s66 = sphi 0, %s52
      %s70 = sphi 0, %s70
      %s72 = sphi 0, %s70
      %s73 = sphi 0, %s72
      %s87 = sphi 0, %s73
      %s93 = sphi 0, %s95
      %s96 = sphi 0, %s93
      %s97 = sphi 0, %s96
      %s113 = sphi 0, %s97
    $region4: #{tpu_custom_call.1} parent=1 // loop_header_branch
      %18 = sbr.rel (%p16) target = $region8
    $region5: #{tpu_custom_call.1} parent=1 // loop_body
      %s20 = ssub.s32 %s15, 1
      %s21 = ssub.s32 %s15, 2
      %s22 = sadd.s32 %s15, 1
      %s23 = ssub.s32 %s15, %s22
      %p24 = scmp.eq.s32.totalorder %s23, 0
      %s26 = sadd.s32 %s25, 1
      %s27 = scalar_select %p24, %s25, %s26
      %p30 = pneg %p24
      %p31 = scmp.eq.s32.totalorder %s15, 1
      %p32 = por %p30, %p31
      %p33 = scmp.ne.s32.totalorder %s25, %s28
      %p34 = scmp.eq.s32.totalorder %s15, 0
      %p35 = por %p33, %p34
      %p36 = scmp.ne.s32.totalorder %s25, %s28
      %p37 = scmp.eq.s32.totalorder %s20, 1
      %p38 = por %p36, %p37
      %p39 = scmp.ne.s32.totalorder %s28, %s29
      %p40 = scmp.eq.s32.totalorder %s20, 0
      %p41 = por %p39, %p40
      %p42 = scmp.ne.s32.totalorder %s28, %s29
      %p43 = scmp.eq.s32.totalorder %s21, 1
      %p44 = por %p42, %p43
      %p46 = scmp.ne.s32.totalorder %s29, %s45
      %p47 = scmp.eq.s32.totalorder %s21, 0
      %p48 = por %p46, %p47
      %s50 = sadd.s32 %s49, 1
      %p53 = scmp.eq.s32.totalorder %s15, 1
      %p54 = scmp.ne.s32.totalorder %s49, %s51
      %p55 = scmp.eq.s32.totalorder %s15, 0
      %p56 = por %p54, %p55
      %p57 = scmp.ne.s32.totalorder %s49, %s51
      %p58 = scmp.eq.s32.totalorder %s20, 1
      %p59 = por %p57, %p58
      %p60 = scmp.ne.s32.totalorder %s51, %s52
      %p61 = scmp.eq.s32.totalorder %s20, 0
      %p62 = por %p60, %p61
      %p63 = scmp.ne.s32.totalorder %s51, %s52
      %p64 = scmp.eq.s32.totalorder %s21, 1
      %p65 = por %p63, %p64
      %p67 = scmp.ne.s32.totalorder %s52, %s66
      %p68 = scmp.eq.s32.totalorder %s21, 0
      %p69 = por %p67, %p68
      %s71 = sadd.s32 %s70, 1
      %p74 = scmp.eq.s32.totalorder %s15, 1
      %p75 = scmp.ne.s32.totalorder %s70, %s72
      %p76 = scmp.eq.s32.totalorder %s15, 0
      %p77 = por %p75, %p76
      %p78 = scmp.ne.s32.totalorder %s70, %s72
      %p79 = scmp.eq.s32.totalorder %s20, 1
      %p80 = por %p78, %p79
      %p81 = scmp.ne.s32.totalorder %s72, %s73
      %p82 = scmp.eq.s32.totalorder %s20, 0
      %p83 = por %p81, %p82
      %p84 = scmp.ne.s32.totalorder %s72, %s73
      %p85 = scmp.eq.s32.totalorder %s21, 1
      %p86 = por %p84, %p85
      %p88 = scmp.ne.s32.totalorder %s73, %s87
      %p89 = scmp.eq.s32.totalorder %s21, 0
      %p90 = por %p88, %p89
      %s91 = ssub.s32 %s15, %s22
      %p92 = scmp.eq.s32.totalorder %s91, 0
      %s94 = sadd.s32 %s93, 1
      %s95 = scalar_select %p92, %s93, %s94
      %p98 = pneg %p92
      %p99 = scmp.eq.s32.totalorder %s15, 1
      %p100 = por %p98, %p99
      %p101 = scmp.ne.s32.totalorder %s93, %s96
      %p102 = scmp.eq.s32.totalorder %s15, 0
      %p103 = por %p101, %p102
      %p104 = scmp.ne.s32.totalorder %s93, %s96
      %p105 = scmp.eq.s32.totalorder %s20, 1
      %p106 = por %p104, %p105
      %p107 = scmp.ne.s32.totalorder %s96, %s97
      %p108 = scmp.eq.s32.totalorder %s20, 0
      %p109 = por %p107, %p108
      %p110 = scmp.ne.s32.totalorder %s96, %s97
      %p111 = scmp.eq.s32.totalorder %s21, 1
      %p112 = por %p110, %p111
      %p114 = scmp.ne.s32.totalorder %s97, %s113
      %p115 = scmp.eq.s32.totalorder %s21, 0
      %p116 = por %p114, %p115
      %p117 = scmp.le.s32.totalorder 1, %s15
      %p118 = scmp.lt.s32.totalorder %s15, 3
      %p119 = pnand %p117, %p118
      %p120 = pneg %p119
      // Predicated region
      $region9: #{tpu_custom_call.1} parent=5 // pred_check
        _
      $region10: #{tpu_custom_call.1} parent=5 // pred_check_branch
        %122 = sbr.rel (%p119) target = $region12
      $region11: #{tpu_custom_call.1} parent=5 // pred_region
        %s123 = ssub.s32 %s15, 1
        // Predicated region
        $region13: #{tpu_custom_call.1} parent=11 // pred_check
          %p124 = pneg %p62
        $region14: #{tpu_custom_call.1} parent=11 // pred_check_branch
          %126 = sbr.rel (%p124) target = $region16
        $region15: #{tpu_custom_call.1} parent=11 // pred_region
          _
        $region16: #{tpu_custom_call.1} parent=11 // pred_fallthru
          _
        // Predicated region
        $region17: #{tpu_custom_call.1} parent=11 // pred_check
          %p127 = pneg %p83
        $region18: #{tpu_custom_call.1} parent=11 // pred_check_branch
          %129 = sbr.rel (%p127) target = $region20
        $region19: #{tpu_custom_call.1} parent=11 // pred_region
          _
        $region20: #{tpu_custom_call.1} parent=11 // pred_fallthru
          _
      $region12: #{tpu_custom_call.1} parent=5 // pred_fallthru
        _
      %p130 = scmp.lt.s32.totalorder %s15, 2
      // Predicated region
      $region21: #{tpu_custom_call.1} parent=5 // pred_check
        %p131 = pneg %p130
      $region22: #{tpu_custom_call.1} parent=5 // pred_check_branch
        %133 = sbr.rel (%p131) target = $region24
      $region23: #{tpu_custom_call.1} parent=5 // pred_region
        // Predicated region
        $region25: #{tpu_custom_call.1} parent=23 // pred_check
          %p134 = pneg %p35
        $region26: #{tpu_custom_call.1} parent=23 // pred_check_branch
          %136 = sbr.rel (%p134) target = $region28
        $region27: #{tpu_custom_call.1} parent=23 // pred_region
          %s137 = sand.u32 %s25, 1
          %s138 = scalar_lea.sflag [#allocation3], %s137
          %s139 = sand.u32 %s25, 1
          %s140 = smul.addr %s139, 64
          %s141 = scalar_lea.vmem [#allocation2], %s140
          %s142 = smul.u32 2, %s15
          %s144 = ssub.s32 1024, 1024
          %145 = vsyncadd %s138, %s144
          %s146 = smul.addr %s142, 4
          %s147 = smul.addr %s146, 128
          %s148 = scalar_lea.hbm %s0, %s147
          %s149 = sshll.u32 %s141, 4
          %s150 = int_to_ptr.vmem [resolvable:$true] %s149
          %155 = dma.hbm_to_vmem [thread:$0]  %s148, 1024, %s150, %s138, 512, 512, 32
        $region28: #{tpu_custom_call.1} parent=23 // pred_fallthru
          _
      $region24: #{tpu_custom_call.1} parent=5 // pred_fallthru
        _
      %p156 = scmp.le.s32.totalorder 1, %s15
      %p157 = scmp.lt.s32.totalorder %s15, 3
      %p158 = pnand %p156, %p157
      %p159 = pneg %p158
      // Predicated region
      $region29: #{tpu_custom_call.1} parent=5 // pred_check
        _
      $region30: #{tpu_custom_call.1} parent=5 // pred_check_branch
        %161 = sbr.rel (%p158) target = $region32
      $region31: #{tpu_custom_call.1} parent=5 // pred_region
        %s162 = ssub.s32 %s15, 1
        %s163 = sand.u32 %s28, 1
        %s164 = scalar_lea.sflag [#allocation3], %s163
        %s165 = sand.u32 %s28, 1
        %s166 = smul.addr %s165, 64
        %s167 = scalar_lea.vmem [#allocation2], %s166
        // Predicated region
        $region33: #{tpu_custom_call.1} parent=31 // pred_check
          %p168 = pneg %p41
        $region34: #{tpu_custom_call.1} parent=31 // pred_check_branch
          %170 = sbr.rel (%p168) target = $region36
        $region35: #{tpu_custom_call.1} parent=31 // pred_region
          %171 = dma.done %s164, 1024
        $region36: #{tpu_custom_call.1} parent=31 // pred_fallthru
          _
        %s172 = sand.u32 %s28, 1
        %s173 = scalar_lea.sflag [#allocation3], %s172
        %s174 = sand.u32 %s28, 1
        %s175 = smul.addr %s174, 64
        %s176 = scalar_lea.vmem [#allocation2], %s175
        %p177 = pneg %p41
        %p178 = pneg %p38
        %p179 = pneg %p62
        %p180 = pneg %p59
        %p181 = pneg %p83
        %p182 = pneg %p80
        %p183 = pneg %p109
        %p184 = pneg %p106
        %s185 = sand.u32 %s96, 1
        %s186 = scalar_lea.sflag [#allocation4], %s185
        %s187 = sand.u32 %s96, 1
        %s188 = smul.addr %s187, 64
        %s189 = scalar_lea.vmem [#allocation5], %s188
        %s190 = smul.u32 2, %s20
        %s191 = smul.u32 2, %s20
        %v192 = vld [vmem:[%s167] sm:$0xff]
        %v193 = vld [vmem:[%s167 + $0x8] sm:$0xff]
        %v194 = vld [vmem:[%s167 + $0x10] sm:$0xff]
        %v195 = vld [vmem:[%s167 + $0x18] sm:$0xff]
        %v196 = vld [vmem:[%s167 + $0x20] sm:$0xff]
        %v197 = vld [vmem:[%s167 + $0x28] sm:$0xff]
        %v198 = vld [vmem:[%s167 + $0x30] sm:$0xff]
        %v199 = vld [vmem:[%s167 + $0x38] sm:$0xff]
        %v200 = vlaneseq
        %v201 = vshrl.u32 %v200, 7
        %v202 = vadd.s32 %v201, 8
        %vm203 = vcmp.lt.s32.totalorder %v201, 0
        %v204 = vsub.s32 0, %v201
        %v205 = vsel %vm203, %v204, %v201
        %v206 = vshrl.u32 %v205, 4
        %v207 = vand.u32 %v205, 15
        %v208 = vsub.s32 0, %v207
        %v209 = vsel %vm203, %v208, %v207
        %vm210 = vcmp.lt.s32.totalorder %v202, 0
        %v211 = vsub.s32 0, %v202
        %v212 = vsel %vm210, %v211, %v202
        %v213 = vshrl.u32 %v212, 4
        %v214 = vand.u32 %v212, 15
        %v215 = vsub.s32 0, %v214
        %v216 = vsel %vm210, %v215, %v214
        %vm217 = vcmp.ne.s32.totalorder %v209, 0
        %vm218 = vcmp.ne.s32.totalorder %v216, 0
        %vm219 = vcmp.lt.s32.totalorder %v209, 0
        %vm220 = vcmp.lt.s32.totalorder %v216, 0
        %vm221 = vmand %vm219, %vm217
        %vm222 = vmand %vm220, %vm218
        %v223 = vadd.s32 %v209, 16
        %v224 = vadd.s32 %v216, 16
        %v225 = vsel %vm221, %v223, %v209
        %v226 = vsel %vm222, %v224, %v216
        %v227 = vld [vmem:[%s2] ss:$4 sm:$0xf]
        %v229 = vlaneseq
        %v230 = vshrl.u32 %v229, 7
        %v231 = vsub.s32 0, %v230
        %v232 = vrot.slane %v227, %v231
        %v233 = vlaneseq
        %v234 = vshrl.u32 %v233, 7
        %v235 = vsub.s32 1, %v234
        %v236 = vrot.slane %v227, %v235
        %v237 = vlaneseq
        %v238 = vshrl.u32 %v237, 7
        %v239 = vsub.s32 2, %v238
        %v240 = vrot.slane %v227, %v239
        %v241 = vlaneseq
        %v242 = vshrl.u32 %v241, 7
        %v243 = vsub.s32 3, %v242
        %v244 = vrot.slane %v227, %v243
        %v249 = vrot.slane %v192, 7
        %v250 = vrot.slane %v193, 7
        %v251 = vrot.slane %v194, 7
        %v252 = vrot.slane %v195, 7
        %v253 = vrot.slane %v196, 7
        %v254 = vrot.slane %v197, 7
        %v255 = vrot.slane %v198, 7
        %v256 = vrot.slane %v199, 7
        %vm257 = vcmp.lt.s32.totalorder %v201, 1
        %v258 = vsel %vm257, %v249, %v253
        %v259 = vsel %vm257, %v250, %v254
        %v260 = vsel %vm257, %v251, %v255
        %v261 = vsel %vm257, %v252, %v256
        %v262 = vsel %vm257, %v253, %v249
        %v263 = vsel %vm257, %v254, %v250
        %v264 = vsel %vm257, %v255, %v251
        %v265 = vsel %vm257, %v256, %v252
        %vm266 = vcmp.ge.s32.totalorder %v225, 1
        %vm267 = vcmp.ge.s32.totalorder %v226, 1
        %v268 = vsel %vm266, 1, 0
        %v269 = vsel %vm267, 1, 0
        %vm270 = vcmp.eq.s32.totalorder %v268, 1
        %vm271 = vcmp.eq.s32.totalorder %v269, 1
        %v272 = vsel %vm270, %v262, 0.0
        %v273 = vsel %vm270, %v263, 0.0
        %v274 = vsel %vm270, %v264, 0.0
        %v275 = vsel %vm270, %v265, 0.0
        %v276 = vsel %vm271, %v258, 0.0
        %v277 = vsel %vm271, %v259, 0.0
        %v278 = vsel %vm271, %v260, 0.0
        %v279 = vsel %vm271, %v261, 0.0
        %280 = vrot.lane.b32.xlu0 %v272, 32
        %v281 = vpop.permute.xlu0 %280
        %282 = vrot.lane.b32.xlu0 %v276, 32
        %v283 = vpop.permute.xlu0 %282
        %284 = vrot.lane.b32.xlu0 %v273, 32
        %v285 = vpop.permute.xlu0 %284
        %286 = vrot.lane.b32.xlu0 %v277, 32
        %v287 = vpop.permute.xlu0 %286
        %288 = vrot.lane.b32.xlu0 %v274, 32
        %v289 = vpop.permute.xlu0 %288
        %290 = vrot.lane.b32.xlu0 %v278, 32
        %v291 = vpop.permute.xlu0 %290
        %292 = vrot.lane.b32.xlu0 %v275, 32
        %v293 = vpop.permute.xlu0 %292
        %294 = vrot.lane.b32.xlu0 %v279, 32
        %v295 = vpop.permute.xlu0 %294
        %v296 = vlaneseq
        %v297 = vand.u32 %v296, 127
        %vm298 = vcmp.lt.s32.totalorder %v297, 32
        %v299 = vsel %vm298, %v289, %v293
        %v300 = vsel %vm298, %v291, %v295
        %v301 = vsel %vm298, %v285, %v289
        %v302 = vsel %vm298, %v287, %v291
        %v303 = vsel %vm298, %v281, %v285
        %v304 = vsel %vm298, %v283, %v287
        %v305 = vsel %vm298, %v293, %v281
        %v306 = vsel %vm298, %v295, %v283
        %v307 = vld [vmem:[%s1] ss:$8 sm:$0xf]
        %v309 = vlaneseq
        %v310 = vshrl.u32 %v309, 7
        %v311 = vsub.s32 0, %v310
        %v312 = vrot.slane %v307, %v311
        %v313 = vlaneseq
        %v314 = vshrl.u32 %v313, 7
        %v315 = vsub.s32 1, %v314
        %v316 = vrot.slane %v307, %v315
        %v317 = vlaneseq
        %v318 = vshrl.u32 %v317, 7
        %v319 = vsub.s32 2, %v318
        %v320 = vrot.slane %v307, %v319
        %v321 = vlaneseq
        %v322 = vshrl.u32 %v321, 7
        %v323 = vsub.s32 3, %v322
        %v324 = vrot.slane %v307, %v323
        %v329 = vmul.f32 %v305, %v312
        %v330 = vmul.f32 %v303, %v316
        %v331 = vmul.f32 %v301, %v320
        %v332 = vmul.f32 %v299, %v324
        %v333 = vmul.f32 %v306, %v312
        %v334 = vmul.f32 %v304, %v316
        %v335 = vmul.f32 %v302, %v320
        %v336 = vmul.f32 %v300, %v324
        %v337 = vadd.f32 %v232, %v329
        %v338 = vadd.f32 %v236, %v330
        %v339 = vadd.f32 %v240, %v331
        %v340 = vadd.f32 %v244, %v332
        %v341 = vadd.f32 %v232, %v333
        %v342 = vadd.f32 %v236, %v334
        %v343 = vadd.f32 %v240, %v335
        %v344 = vadd.f32 %v244, %v336
        %s345 = scalar_lea.vmem %s1, 1
        %v346 = vld [vmem:[%s345] ss:$8 sm:$0xf]
        %v348 = vlaneseq
        %v349 = vshrl.u32 %v348, 7
        %v350 = vsub.s32 0, %v349
        %v351 = vrot.slane %v346, %v350
        %v352 = vlaneseq
        %v353 = vshrl.u32 %v352, 7
        %v354 = vsub.s32 1, %v353
        %v355 = vrot.slane %v346, %v354
        %v356 = vlaneseq
        %v357 = vshrl.u32 %v356, 7
        %v358 = vsub.s32 2, %v357
        %v359 = vrot.slane %v346, %v358
        %v360 = vlaneseq
        %v361 = vshrl.u32 %v360, 7
        %v362 = vsub.s32 3, %v361
        %v363 = vrot.slane %v346, %v362
        %v368 = vmul.f32 %v272, %v351
        %v369 = vmul.f32 %v273, %v355
        %v370 = vmul.f32 %v274, %v359
        %v371 = vmul.f32 %v275, %v363
        %v372 = vmul.f32 %v276, %v351
        %v373 = vmul.f32 %v277, %v355
        %v374 = vmul.f32 %v278, %v359
        %v375 = vmul.f32 %v279, %v363
        %v376 = vadd.f32 %v337, %v368
        %v377 = vadd.f32 %v338, %v369
        %v378 = vadd.f32 %v339, %v370
        %v379 = vadd.f32 %v340, %v371
        %v380 = vadd.f32 %v341, %v372
        %v381 = vadd.f32 %v342, %v373
        %v382 = vadd.f32 %v343, %v374
        %v383 = vadd.f32 %v344, %v375
        %384 = vrot.lane.b32.xlu0 %v272, 96
        %v385 = vpop.permute.xlu0 %384
        %386 = vrot.lane.b32.xlu0 %v276, 96
        %v387 = vpop.permute.xlu0 %386
        %388 = vrot.lane.b32.xlu0 %v273, 96
        %v389 = vpop.permute.xlu0 %388
        %390 = vrot.lane.b32.xlu0 %v277, 96
        %v391 = vpop.permute.xlu0 %390
        %392 = vrot.lane.b32.xlu0 %v274, 96
        %v393 = vpop.permute.xlu0 %392
        %394 = vrot.lane.b32.xlu0 %v278, 96
        %v395 = vpop.permute.xlu0 %394
        %396 = vrot.lane.b32.xlu0 %v275, 96
        %v397 = vpop.permute.xlu0 %396
        %398 = vrot.lane.b32.xlu0 %v279, 96
        %v399 = vpop.permute.xlu0 %398
        %vm400 = vcmp.lt.s32.totalorder %v297, 96
        %v401 = vsel %vm400, %v393, %v397
        %v402 = vsel %vm400, %v395, %v399
        %v403 = vsel %vm400, %v389, %v393
        %v404 = vsel %vm400, %v391, %v395
        %v405 = vsel %vm400, %v385, %v389
        %v406 = vsel %vm400, %v387, %v391
        %v407 = vsel %vm400, %v397, %v385
        %v408 = vsel %vm400, %v399, %v387
        %s409 = scalar_lea.vmem %s1, 2
        %v410 = vld [vmem:[%s409] ss:$8 sm:$0xf]
        %v412 = vlaneseq
        %v413 = vshrl.u32 %v412, 7
        %v414 = vsub.s32 0, %v413
        %v415 = vrot.slane %v410, %v414
        %v416 = vlaneseq
        %v417 = vshrl.u32 %v416, 7
        %v418 = vsub.s32 1, %v417
        %v419 = vrot.slane %v410, %v418
        %v420 = vlaneseq
        %v421 = vshrl.u32 %v420, 7
        %v422 = vsub.s32 2, %v421
        %v423 = vrot.slane %v410, %v422
        %v424 = vlaneseq
        %v425 = vshrl.u32 %v424, 7
        %v426 = vsub.s32 3, %v425
        %v427 = vrot.slane %v410, %v426
        %v432 = vmul.f32 %v405, %v415
        %v433 = vmul.f32 %v403, %v419
        %v434 = vmul.f32 %v401, %v423
        %v435 = vmul.f32 %v407, %v427
        %v436 = vmul.f32 %v406, %v415
        %v437 = vmul.f32 %v404, %v419
        %v438 = vmul.f32 %v402, %v423
        %v439 = vmul.f32 %v408, %v427
        %v440 = vadd.f32 %v376, %v432
        %v441 = vadd.f32 %v377, %v433
        %v442 = vadd.f32 %v378, %v434
        %v443 = vadd.f32 %v379, %v435
        %v444 = vadd.f32 %v380, %v436
        %v445 = vadd.f32 %v381, %v437
        %v446 = vadd.f32 %v382, %v438
        %v447 = vadd.f32 %v383, %v439
        %448 = vrot.lane.b32.xlu0 %v192, 32
        %v449 = vpop.permute.xlu0 %448
        %450 = vrot.lane.b32.xlu0 %v196, 32
        %v451 = vpop.permute.xlu0 %450
        %452 = vrot.lane.b32.xlu0 %v193, 32
        %v453 = vpop.permute.xlu0 %452
        %454 = vrot.lane.b32.xlu0 %v197, 32
        %v455 = vpop.permute.xlu0 %454
        %456 = vrot.lane.b32.xlu0 %v194, 32
        %v457 = vpop.permute.xlu0 %456
        %458 = vrot.lane.b32.xlu0 %v198, 32
        %v459 = vpop.permute.xlu0 %458
        %460 = vrot.lane.b32.xlu0 %v195, 32
        %v461 = vpop.permute.xlu0 %460
        %462 = vrot.lane.b32.xlu0 %v199, 32
        %v463 = vpop.permute.xlu0 %462
        %v464 = vsel %vm298, %v457, %v461
        %v465 = vsel %vm298, %v459, %v463
        %v466 = vsel %vm298, %v453, %v457
        %v467 = vsel %vm298, %v455, %v459
        %v468 = vsel %vm298, %v449, %v453
        %v469 = vsel %vm298, %v451, %v455
        %v470 = vsel %vm298, %v461, %v449
        %v471 = vsel %vm298, %v463, %v451
        %s472 = scalar_lea.vmem %s1, 3
        %v473 = vld [vmem:[%s472] ss:$8 sm:$0xf]
        %v475 = vlaneseq
        %v476 = vshrl.u32 %v475, 7
        %v477 = vsub.s32 0, %v476
        %v478 = vrot.slane %v473, %v477
        %v479 = vlaneseq
        %v480 = vshrl.u32 %v479, 7
        %v481 = vsub.s32 1, %v480
        %v482 = vrot.slane %v473, %v481
        %v483 = vlaneseq
        %v484 = vshrl.u32 %v483, 7
        %v485 = vsub.s32 2, %v484
        %v486 = vrot.slane %v473, %v485
        %v487 = vlaneseq
        %v488 = vshrl.u32 %v487, 7
        %v489 = vsub.s32 3, %v488
        %v490 = vrot.slane %v473, %v489
        %v495 = vmul.f32 %v470, %v478
        %v496 = vmul.f32 %v468, %v482
        %v497 = vmul.f32 %v466, %v486
        %v498 = vmul.f32 %v464, %v490
        %v499 = vmul.f32 %v471, %v478
        %v500 = vmul.f32 %v469, %v482
        %v501 = vmul.f32 %v467, %v486
        %v502 = vmul.f32 %v465, %v490
        %v503 = vadd.f32 %v440, %v495
        %v504 = vadd.f32 %v441, %v496
        %v505 = vadd.f32 %v442, %v497
        %v506 = vadd.f32 %v443, %v498
        %v507 = vadd.f32 %v444, %v499
        %v508 = vadd.f32 %v445, %v500
        %v509 = vadd.f32 %v446, %v501
        %v510 = vadd.f32 %v447, %v502
        %s511 = scalar_lea.vmem %s1, 4
        %v512 = vld [vmem:[%s511] ss:$8 sm:$0xf]
        %v514 = vlaneseq
        %v515 = vshrl.u32 %v514, 7
        %v516 = vsub.s32 0, %v515
        %v517 = vrot.slane %v512, %v516
        %v518 = vlaneseq
        %v519 = vshrl.u32 %v518, 7
        %v520 = vsub.s32 1, %v519
        %v521 = vrot.slane %v512, %v520
        %v522 = vlaneseq
        %v523 = vshrl.u32 %v522, 7
        %v524 = vsub.s32 2, %v523
        %v525 = vrot.slane %v512, %v524
        %v526 = vlaneseq
        %v527 = vshrl.u32 %v526, 7
        %v528 = vsub.s32 3, %v527
        %v529 = vrot.slane %v512, %v528
        %v534 = vmul.f32 %v192, %v517
        %v535 = vmul.f32 %v193, %v521
        %v536 = vmul.f32 %v194, %v525
        %v537 = vmul.f32 %v195, %v529
        %v538 = vmul.f32 %v196, %v517
        %v539 = vmul.f32 %v197, %v521
        %v540 = vmul.f32 %v198, %v525
        %v541 = vmul.f32 %v199, %v529
        %v542 = vadd.f32 %v503, %v534
        %v543 = vadd.f32 %v504, %v535
        %v544 = vadd.f32 %v505, %v536
        %v545 = vadd.f32 %v506, %v537
        %v546 = vadd.f32 %v507, %v538
        %v547 = vadd.f32 %v508, %v539
        %v548 = vadd.f32 %v509, %v540
        %v549 = vadd.f32 %v510, %v541
        %550 = vrot.lane.b32.xlu0 %v192, 96
        %v551 = vpop.permute.xlu0 %550
        %552 = vrot.lane.b32.xlu0 %v196, 96
        %v553 = vpop.permute.xlu0 %552
        %554 = vrot.lane.b32.xlu0 %v193, 96
        %v555 = vpop.permute.xlu0 %554
        %556 = vrot.lane.b32.xlu0 %v197, 96
        %v557 = vpop.permute.xlu0 %556
        %558 = vrot.lane.b32.xlu0 %v194, 96
        %v559 = vpop.permute.xlu0 %558
        %560 = vrot.lane.b32.xlu0 %v198, 96
        %v561 = vpop.permute.xlu0 %560
        %562 = vrot.lane.b32.xlu0 %v195, 96
        %v563 = vpop.permute.xlu0 %562
        %564 = vrot.lane.b32.xlu0 %v199, 96
        %v565 = vpop.permute.xlu0 %564
        %v566 = vsel %vm400, %v559, %v563
        %v567 = vsel %vm400, %v561, %v565
        %v568 = vsel %vm400, %v555, %v559
        %v569 = vsel %vm400, %v557, %v561
        %v570 = vsel %vm400, %v551, %v555
        %v571 = vsel %vm400, %v553, %v557
        %v572 = vsel %vm400, %v563, %v551
        %v573 = vsel %vm400, %v565, %v553
        %s574 = scalar_lea.vmem %s1, 5
        %v575 = vld [vmem:[%s574] ss:$8 sm:$0xf]
        %v577 = vlaneseq
        %v578 = vshrl.u32 %v577, 7
        %v579 = vsub.s32 0, %v578
        %v580 = vrot.slane %v575, %v579
        %v581 = vlaneseq
        %v582 = vshrl.u32 %v581, 7
        %v583 = vsub.s32 1, %v582
        %v584 = vrot.slane %v575, %v583
        %v585 = vlaneseq
        %v586 = vshrl.u32 %v585, 7
        %v587 = vsub.s32 2, %v586
        %v588 = vrot.slane %v575, %v587
        %v589 = vlaneseq
        %v590 = vshrl.u32 %v589, 7
        %v591 = vsub.s32 3, %v590
        %v592 = vrot.slane %v575, %v591
        %v597 = vmul.f32 %v570, %v580
        %v598 = vmul.f32 %v568, %v584
        %v599 = vmul.f32 %v566, %v588
        %v600 = vmul.f32 %v572, %v592
        %v601 = vmul.f32 %v571, %v580
        %v602 = vmul.f32 %v569, %v584
        %v603 = vmul.f32 %v567, %v588
        %v604 = vmul.f32 %v573, %v592
        %v605 = vadd.f32 %v542, %v597
        %v606 = vadd.f32 %v543, %v598
        %v607 = vadd.f32 %v544, %v599
        %v608 = vadd.f32 %v545, %v600
        %v609 = vadd.f32 %v546, %v601
        %v610 = vadd.f32 %v547, %v602
        %v611 = vadd.f32 %v548, %v603
        %v612 = vadd.f32 %v549, %v604
        %v613 = vrot.slane %v192, 1
        %v614 = vrot.slane %v193, 1
        %v615 = vrot.slane %v194, 1
        %v616 = vrot.slane %v195, 1
        %v617 = vrot.slane %v196, 1
        %v618 = vrot.slane %v197, 1
        %v619 = vrot.slane %v198, 1
        %v620 = vrot.slane %v199, 1
        %vm621 = vcmp.lt.s32.totalorder %v201, 7
        %v622 = vsel %vm621, %v613, %v617
        %v623 = vsel %vm621, %v614, %v618
        %v624 = vsel %vm621, %v615, %v619
        %v625 = vsel %vm621, %v616, %v620
        %v626 = vsel %vm621, %v617, %v613
        %v627 = vsel %vm621, %v618, %v614
        %v628 = vsel %vm621, %v619, %v615
        %v629 = vsel %vm621, %v620, %v616
        %vm630 = vcmp.lt.s32.totalorder %v225, 15
        %vm631 = vcmp.lt.s32.totalorder %v226, 15
        %v632 = vsel %vm630, 1, 0
        %v633 = vsel %vm631, 1, 0
        %vm634 = vcmp.eq.s32.totalorder %v632, 1
        %vm635 = vcmp.eq.s32.totalorder %v633, 1
        %v636 = vsel %vm634, %v622, 0.0
        %v637 = vsel %vm634, %v623, 0.0
        %v638 = vsel %vm634, %v624, 0.0
        %v639 = vsel %vm634, %v625, 0.0
        %v640 = vsel %vm635, %v626, 0.0
        %v641 = vsel %vm635, %v627, 0.0
        %v642 = vsel %vm635, %v628, 0.0
        %v643 = vsel %vm635, %v629, 0.0
        %644 = vrot.lane.b32.xlu0 %v636, 32
        %v645 = vpop.permute.xlu0 %644
        %646 = vrot.lane.b32.xlu0 %v640, 32
        %v647 = vpop.permute.xlu0 %646
        %648 = vrot.lane.b32.xlu0 %v637, 32
        %v649 = vpop.permute.xlu0 %648
        %650 = vrot.lane.b32.xlu0 %v641, 32
        %v651 = vpop.permute.xlu0 %650
        %652 = vrot.lane.b32.xlu0 %v638, 32
        %v653 = vpop.permute.xlu0 %652
        %654 = vrot.lane.b32.xlu0 %v642, 32
        %v655 = vpop.permute.xlu0 %654
        %656 = vrot.lane.b32.xlu0 %v639, 32
        %v657 = vpop.permute.xlu0 %656
        %658 = vrot.lane.b32.xlu0 %v643, 32
        %v659 = vpop.permute.xlu0 %658
        %v660 = vsel %vm298, %v653, %v657
        %v661 = vsel %vm298, %v655, %v659
        %v662 = vsel %vm298, %v649, %v653
        %v663 = vsel %vm298, %v651, %v655
        %v664 = vsel %vm298, %v645, %v649
        %v665 = vsel %vm298, %v647, %v651
        %v666 = vsel %vm298, %v657, %v645
        %v667 = vsel %vm298, %v659, %v647
        %s668 = scalar_lea.vmem %s1, 6
        %v669 = vld [vmem:[%s668] ss:$8 sm:$0xf]
        %v671 = vlaneseq
        %v672 = vshrl.u32 %v671, 7
        %v673 = vsub.s32 0, %v672
        %v674 = vrot.slane %v669, %v673
        %v675 = vlaneseq
        %v676 = vshrl.u32 %v675, 7
        %v677 = vsub.s32 1, %v676
        %v678 = vrot.slane %v669, %v677
        %v679 = vlaneseq
        %v680 = vshrl.u32 %v679, 7
        %v681 = vsub.s32 2, %v680
        %v682 = vrot.slane %v669, %v681
        %v683 = vlaneseq
        %v684 = vshrl.u32 %v683, 7
        %v685 = vsub.s32 3, %v684
        %v686 = vrot.slane %v669, %v685
        %v691 = vmul.f32 %v666, %v674
        %v692 = vmul.f32 %v664, %v678
        %v693 = vmul.f32 %v662, %v682
        %v694 = vmul.f32 %v660, %v686
        %v695 = vmul.f32 %v667, %v674
        %v696 = vmul.f32 %v665, %v678
        %v697 = vmul.f32 %v663, %v682
        %v698 = vmul.f32 %v661, %v686
        %v699 = vadd.f32 %v605, %v691
        %v700 = vadd.f32 %v606, %v692
        %v701 = vadd.f32 %v607, %v693
        %v702 = vadd.f32 %v608, %v694
        %v703 = vadd.f32 %v609, %v695
        %v704 = vadd.f32 %v610, %v696
        %v705 = vadd.f32 %v611, %v697
        %v706 = vadd.f32 %v612, %v698
        %s707 = scalar_lea.vmem %s1, 7
        %v708 = vld [vmem:[%s707] ss:$8 sm:$0xf]
        %v710 = vlaneseq
        %v711 = vshrl.u32 %v710, 7
        %v712 = vsub.s32 0, %v711
        %v713 = vrot.slane %v708, %v712
        %v714 = vlaneseq
        %v715 = vshrl.u32 %v714, 7
        %v716 = vsub.s32 1, %v715
        %v717 = vrot.slane %v708, %v716
        %v718 = vlaneseq
        %v719 = vshrl.u32 %v718, 7
        %v720 = vsub.s32 2, %v719
        %v721 = vrot.slane %v708, %v720
        %v722 = vlaneseq
        %v723 = vshrl.u32 %v722, 7
        %v724 = vsub.s32 3, %v723
        %v725 = vrot.slane %v708, %v724
        %v730 = vmul.f32 %v636, %v713
        %v731 = vmul.f32 %v637, %v717
        %v732 = vmul.f32 %v638, %v721
        %v733 = vmul.f32 %v639, %v725
        %v734 = vmul.f32 %v640, %v713
        %v735 = vmul.f32 %v641, %v717
        %v736 = vmul.f32 %v642, %v721
        %v737 = vmul.f32 %v643, %v725
        %v738 = vadd.f32 %v699, %v730
        %v739 = vadd.f32 %v700, %v731
        %v740 = vadd.f32 %v701, %v732
        %v741 = vadd.f32 %v702, %v733
        %v742 = vadd.f32 %v703, %v734
        %v743 = vadd.f32 %v704, %v735
        %v744 = vadd.f32 %v705, %v736
        %v745 = vadd.f32 %v706, %v737
        %746 = vrot.lane.b32.xlu0 %v636, 96
        %v747 = vpop.permute.xlu0 %746
        %748 = vrot.lane.b32.xlu0 %v640, 96
        %v749 = vpop.permute.xlu0 %748
        %750 = vrot.lane.b32.xlu0 %v637, 96
        %v751 = vpop.permute.xlu0 %750
        %752 = vrot.lane.b32.xlu0 %v641, 96
        %v753 = vpop.permute.xlu0 %752
        %754 = vrot.lane.b32.xlu0 %v638, 96
        %v755 = vpop.permute.xlu0 %754
        %756 = vrot.lane.b32.xlu0 %v642, 96
        %v757 = vpop.permute.xlu0 %756
        %758 = vrot.lane.b32.xlu0 %v639, 96
        %v759 = vpop.permute.xlu0 %758
        %760 = vrot.lane.b32.xlu0 %v643, 96
        %v761 = vpop.permute.xlu0 %760
        %v762 = vsel %vm400, %v755, %v759
        %v763 = vsel %vm400, %v757, %v761
        %v764 = vsel %vm400, %v751, %v755
        %v765 = vsel %vm400, %v753, %v757
        %v766 = vsel %vm400, %v747, %v751
        %v767 = vsel %vm400, %v749, %v753
        %v768 = vsel %vm400, %v759, %v747
        %v769 = vsel %vm400, %v761, %v749
        %s770 = scalar_lea.vmem %s1, 32
        %v771 = vld [vmem:[%s770] ss:$8 sm:$0xf]
        %v773 = vlaneseq
        %v774 = vshrl.u32 %v773, 7
        %v775 = vsub.s32 0, %v774
        %v776 = vrot.slane %v771, %v775
        %v777 = vlaneseq
        %v778 = vshrl.u32 %v777, 7
        %v779 = vsub.s32 1, %v778
        %v780 = vrot.slane %v771, %v779
        %v781 = vlaneseq
        %v782 = vshrl.u32 %v781, 7
        %v783 = vsub.s32 2, %v782
        %v784 = vrot.slane %v771, %v783
        %v785 = vlaneseq
        %v786 = vshrl.u32 %v785, 7
        %v787 = vsub.s32 3, %v786
        %v788 = vrot.slane %v771, %v787
        %v793 = vmul.f32 %v766, %v776
        %v794 = vmul.f32 %v764, %v780
        %v795 = vmul.f32 %v762, %v784
        %v796 = vmul.f32 %v768, %v788
        %v797 = vmul.f32 %v767, %v776
        %v798 = vmul.f32 %v765, %v780
        %v799 = vmul.f32 %v763, %v784
        %v800 = vmul.f32 %v769, %v788
        %v801 = vadd.f32 %v738, %v793
        %v802 = vadd.f32 %v739, %v794
        %v803 = vadd.f32 %v740, %v795
        %v804 = vadd.f32 %v741, %v796
        %v805 = vadd.f32 %v742, %v797
        %v806 = vadd.f32 %v743, %v798
        %v807 = vadd.f32 %v744, %v799
        %v808 = vadd.f32 %v745, %v800
        %v809 = vmul.f32 %v801, 0.5
        %v810 = vmul.f32 %v802, 0.5
        %v811 = vmul.f32 %v803, 0.5
        %v812 = vmul.f32 %v804, 0.5
        %v813 = vmul.f32 %v805, 0.5
        %v814 = vmul.f32 %v806, 0.5
        %v815 = vmul.f32 %v807, 0.5
        %v816 = vmul.f32 %v808, 0.5
        %v817 = vmul.f32 %v801, 0.70710677
        %v818 = vmul.f32 %v802, 0.70710677
        %v819 = vmul.f32 %v803, 0.70710677
        %v820 = vmul.f32 %v804, 0.70710677
        %v821 = vmul.f32 %v805, 0.70710677
        %v822 = vmul.f32 %v806, 0.70710677
        %v823 = vmul.f32 %v807, 0.70710677
        %v824 = vmul.f32 %v808, 0.70710677
        %v825 = verf.f32.pop %v817
        %v826 = verf.f32.pop %v818
        %v827 = verf.f32.pop %v819
        %v828 = verf.f32.pop %v820
        %v829 = verf.f32.pop %v821
        %v830 = verf.f32.pop %v822
        %v831 = verf.f32.pop %v823
        %v832 = verf.f32.pop %v824
        %v833 = vadd.f32 %v825, 1.0
        %v834 = vadd.f32 %v826, 1.0
        %v835 = vadd.f32 %v827, 1.0
        %v836 = vadd.f32 %v828, 1.0
        %v837 = vadd.f32 %v829, 1.0
        %v838 = vadd.f32 %v830, 1.0
        %v839 = vadd.f32 %v831, 1.0
        %v840 = vadd.f32 %v832, 1.0
        %v841 = vmul.f32 %v809, %v833
        %v842 = vmul.f32 %v810, %v834
        %v843 = vmul.f32 %v811, %v835
        %v844 = vmul.f32 %v812, %v836
        %v845 = vmul.f32 %v813, %v837
        %v846 = vmul.f32 %v814, %v838
        %v847 = vmul.f32 %v815, %v839
        %v848 = vmul.f32 %v816, %v840
        %s849 = scalar_lea.vmem %s2, 1
        %v850 = vld [vmem:[%s849] ss:$4 sm:$0xf]
        %v852 = vlaneseq
        %v853 = vshrl.u32 %v852, 7
        %v854 = vsub.s32 0, %v853
        %v855 = vrot.slane %v850, %v854
        %v856 = vlaneseq
        %v857 = vshrl.u32 %v856, 7
        %v858 = vsub.s32 1, %v857
        %v859 = vrot.slane %v850, %v858
        %v860 = vlaneseq
        %v861 = vshrl.u32 %v860, 7
        %v862 = vsub.s32 2, %v861
        %v863 = vrot.slane %v850, %v862
        %v864 = vlaneseq
        %v865 = vshrl.u32 %v864, 7
        %v866 = vsub.s32 3, %v865
        %v867 = vrot.slane %v850, %v866
        %v872 = vmul.f32 %v841, %v855
        %v873 = vmul.f32 %v842, %v859
        %v874 = vmul.f32 %v843, %v863
        %v875 = vmul.f32 %v844, %v867
        %v876 = vmul.f32 %v845, %v855
        %v877 = vmul.f32 %v846, %v859
        %v878 = vmul.f32 %v847, %v863
        %v879 = vmul.f32 %v848, %v867
        %s880 = scalar_lea.vmem %s2, 2
        %v881 = vld [vmem:[%s880] ss:$4 sm:$0xf]
        %v883 = vlaneseq
        %v884 = vshrl.u32 %v883, 7
        %v885 = vsub.s32 0, %v884
        %v886 = vrot.slane %v881, %v885
        %v887 = vlaneseq
        %v888 = vshrl.u32 %v887, 7
        %v889 = vsub.s32 1, %v888
        %v890 = vrot.slane %v881, %v889
        %v891 = vlaneseq
        %v892 = vshrl.u32 %v891, 7
        %v893 = vsub.s32 2, %v892
        %v894 = vrot.slane %v881, %v893
        %v895 = vlaneseq
        %v896 = vshrl.u32 %v895, 7
        %v897 = vsub.s32 3, %v896
        %v898 = vrot.slane %v881, %v897
        %v903 = vadd.f32 %v872, %v886
        %v904 = vadd.f32 %v873, %v890
        %v905 = vadd.f32 %v874, %v894
        %v906 = vadd.f32 %v875, %v898
        %v907 = vadd.f32 %v876, %v886
        %v908 = vadd.f32 %v877, %v890
        %v909 = vadd.f32 %v878, %v894
        %v910 = vadd.f32 %v879, %v898
        %v911 = vadd.f32 %v903, %v192
        %v912 = vadd.f32 %v904, %v193
        %v913 = vadd.f32 %v905, %v194
        %v914 = vadd.f32 %v906, %v195
        %v915 = vadd.f32 %v907, %v196
        %v916 = vadd.f32 %v908, %v197
        %v917 = vadd.f32 %v909, %v198
        %v918 = vadd.f32 %v910, %v199
        %919 = vst [vmem:[%s189] sm:$0xff] %v911
        %920 = vst [vmem:[%s189 + $0x8] sm:$0xff] %v912
        %921 = vst [vmem:[%s189 + $0x10] sm:$0xff] %v913
        %922 = vst [vmem:[%s189 + $0x18] sm:$0xff] %v914
        %923 = vst [vmem:[%s189 + $0x20] sm:$0xff] %v915
        %924 = vst [vmem:[%s189 + $0x28] sm:$0xff] %v916
        %925 = vst [vmem:[%s189 + $0x30] sm:$0xff] %v917
        %926 = vst [vmem:[%s189 + $0x38] sm:$0xff] %v918
        %s927 = sand.u32 %s96, 1
        %s928 = scalar_lea.sflag [#allocation4], %s927
        %s929 = sand.u32 %s96, 1
        %s930 = smul.addr %s929, 64
        %s931 = scalar_lea.vmem [#allocation5], %s930
        // Predicated region
        $region37: #{tpu_custom_call.1} parent=31 // pred_check
          %p932 = pneg %p106
        $region38: #{tpu_custom_call.1} parent=31 // pred_check_branch
          %934 = sbr.rel (%p932) target = $region40
        $region39: #{tpu_custom_call.1} parent=31 // pred_region
          %s935 = smul.u32 2, %s20
          %s937 = ssub.s32 1024, 1024
          %938 = vsyncadd %s928, %s937
          %s939 = smul.addr %s935, 4
          %s940 = smul.addr %s939, 128
          %s941 = scalar_lea.hbm %s3, %s940
          %s942 = sshll.u32 %s931, 4
          %s943 = int_to_ptr.vmem [resolvable:$true] %s942
          %948 = dma.vmem_to_hbm [thread:$0]  %s943, 1024, %s941, %s928, 512, 512, 32
        $region40: #{tpu_custom_call.1} parent=31 // pred_fallthru
          _
      $region32: #{tpu_custom_call.1} parent=5 // pred_fallthru
        _
      %p949 = scmp.le.s32.totalorder 2, %s15
      // Predicated region
      $region41: #{tpu_custom_call.1} parent=5 // pred_check
        %p950 = pneg %p949
      $region42: #{tpu_custom_call.1} parent=5 // pred_check_branch
        %952 = sbr.rel (%p950) target = $region44
      $region43: #{tpu_custom_call.1} parent=5 // pred_region
        %s953 = ssub.s32 %s15, 2
        // Predicated region
        $region45: #{tpu_custom_call.1} parent=43 // pred_check
          %p954 = pneg %p112
        $region46: #{tpu_custom_call.1} parent=43 // pred_check_branch
          %956 = sbr.rel (%p954) target = $region48
        $region47: #{tpu_custom_call.1} parent=43 // pred_region
          %s957 = sand.u32 %s97, 1
          %s958 = scalar_lea.sflag [#allocation4], %s957
          %s959 = sand.u32 %s97, 1
          %s960 = smul.addr %s959, 64
          %s961 = scalar_lea.vmem [#allocation5], %s960
          %962 = dma.done %s958, 1024
        $region48: #{tpu_custom_call.1} parent=43 // pred_fallthru
          _
      $region44: #{tpu_custom_call.1} parent=5 // pred_fallthru
        _
    $region6: #{tpu_custom_call.1} parent=1 // loop_footer
      %s19 = sadd.s32 1, %s15
    $region7: #{tpu_custom_call.1} parent=1 // loop_footer_branch
      %14 = sbr.rel target = $region3
    $region8: #{tpu_custom_call.1} parent=1 // loop_exit
      _
    %963 = vsyncpa [#allocation3], 1
    %s964 = scalar_lea.sflag [#allocation3], 1
    %965 = vsyncpa %s964, 1
    %966 = vsyncpa [#allocation4], 1
    %s967 = scalar_lea.sflag [#allocation4], 1
    %968 = vsyncpa %s967, 1

</llo_original>
